<compile_context>
chip_gen: v6e
topology: v6e:2x2x1
jax: 0.10.0
libtpu: 0.0.40
codegen_flags: <defaults>
</compile_context>

<pallas_src>
import functools

import jax
import jax.numpy as jnp
from jax import lax
from jax.experimental import pallas as pl
from jax.experimental.pallas import tpu as pltpu

_LANE = 128
_SUBLANE = 8


def _ce_partial_kernel(logits_ref, tgt_ref, out_ref, *, n_classes: int, hw: int,
                       needs_mask: bool):
    """Partial cross-entropy sums for one (sample, position-tile) grid cell.

    logits_ref: (1, C, S, 128)  logits tile; positions on the (sublane, lane) grid
    tgt_ref:    (1, S, 128)     int32 target class per position (fully dense)
    out_ref:    (1, 1, 8, 128)  f32 lane/sublane-dense partial sums for this tile
    """
    C = n_classes
    S, L = tgt_ref.shape[1], tgt_ref.shape[2]
    tgt = tgt_ref[0]                                            # (S, L) int32

    # ---- class reductions: unrolled over C (static, small), pure VPU + EUP ---------
    # Pass 1: running max over classes (numerical stability).  Upcast per-class slab
    # in-kernel (free VPU); live vector state stays O(S*128), independent of C.
    m = logits_ref[0, 0].astype(jnp.float32)                    # (S, L)
    for c in range(1, C):
        m = jnp.maximum(m, logits_ref[0, c].astype(jnp.float32))
    # Pass 2: sum of exp + one-hot pick of the target-class logit.
    s = jnp.zeros((S, L), jnp.float32)
    picked = jnp.zeros((S, L), jnp.float32)
    for c in range(C):
        xc = logits_ref[0, c].astype(jnp.float32)
        s = s + jnp.exp(xc - m)                                 # EUP
        picked = picked + jnp.where(tgt == c, xc, 0.0)          # VPU compare/select

    per_pos = m + jnp.log(s) - picked                           # (S, L)  lse - target logit

    # ---- tail mask: only compiled when the tiled view contains padded positions -----
    if needs_mask:
        t = pl.program_id(1)
        row = lax.broadcasted_iota(jnp.int32, (S, L), 0)
        if hw % L == 0:
            # Padded region is whole chunks (Pallas edge-padding of the last tile).
            valid = (t * S + row) < (hw // L)
        else:
            lane = lax.broadcasted_iota(jnp.int32, (S, L), 1)
            valid = ((t * S + row) * L + lane) < hw
        # Must stay a select (not a 0/1 multiply): edge-padded data may be inf/NaN.
        per_pos = jnp.where(valid, per_pos, 0.0)

    # ---- reduce to a lane/sublane-dense (8, 128) partial: S/8 vreg adds, no XLU -----
    if S % _SUBLANE == 0:
        acc = per_pos.reshape(S // _SUBLANE, _SUBLANE, L).sum(axis=0)
    else:
        # Small full-extent tile (S = n_chunks < 8 or odd): one cheap sublane reduce,
        # result placed in row 0 of the dense output slab.
        total = jnp.sum(per_pos, axis=0, keepdims=True)         # (1, L)
        row = lax.broadcasted_iota(jnp.int32, (_SUBLANE, L), 0)
        acc = jnp.where(row == 0, jnp.broadcast_to(total, (_SUBLANE, L)), 0.0)

    out_ref[...] = acc.reshape(1, 1, _SUBLANE, L)


@jax.jit
def keypoint_cross_entropy_loss(output: jax.Array, target: jax.Array) -> jax.Array:
    """Pallas equivalent of KeypointCrossEntropyLoss.forward (mean reduction)."""
    N, C, H, W = output.shape
    assert target.shape == (N, H, W)
    HW = H * W
    n_chunks = -(-HW // _LANE)                                   # ceil(HW / 128)

    # Free contiguous views when HW % 128 == 0 (typical heatmaps); otherwise zero-pad
    # the flattened position axis once (rare shapes only).
    logits = output.reshape(N, C, HW)
    tgt = target.reshape(N, HW).astype(jnp.int32)
    if HW % _LANE:
        pad = n_chunks * _LANE - HW
        logits = jnp.pad(logits, ((0, 0), (0, 0), (0, pad)))
        tgt = jnp.pad(tgt, ((0, 0), (0, pad)))
    logits = logits.reshape(N, C, n_chunks, _LANE)
    tgt = tgt.reshape(N, n_chunks, _LANE)

    # ---- tile sizing --------------------------------------------------------------
    itemsize = logits.dtype.itemsize
    align = _SUBLANE * max(1, 4 // itemsize)                     # 8 (f32) / 16 (bf16)
    # Real per-chunk VMEM footprint: double-buffered logits + target inputs plus the
    # kernel's live f32 temporaries (~6-8 (S,128) slabs, independent of C).
    per_chunk = 2 * (C * _LANE * itemsize + _LANE * 4) + 8 * _LANE * 4
    vmem_budget = 24 * 1024 * 1024                               # headroom under limit
    budget_chunks = max(align, vmem_budget // per_chunk)
    # Keep >= ~8 balanced grid cells so both v7x TensorCores stay busy (neutral on
    # single-TC v5e/v6e).
    tiles_wanted = max(1, -(-8 // N))
    balance_chunks = -(-n_chunks // tiles_wanted)
    tile_chunks = min(budget_chunks, balance_chunks)
    tile_chunks = -(-tile_chunks // align) * align               # sublane alignment
    if tile_chunks >= n_chunks:
        tile_chunks = n_chunks                                   # full extent: legal
    num_tiles = -(-n_chunks // tile_chunks)
    needs_mask = (num_tiles * tile_chunks * _LANE) != HW

    kernel = functools.partial(_ce_partial_kernel, n_classes=C, hw=HW,
                               needs_mask=needs_mask)

    cost = pl.CostEstimate(
        flops=4 * N * C * HW,
        transcendentals=(C + 1) * N * HW,
        bytes_accessed=N * C * HW * itemsize + N * HW * 4
        + N * num_tiles * _SUBLANE * _LANE * 4,
    )

    partials = pl.pallas_call(
        kernel,
        out_shape=jax.ShapeDtypeStruct((N, num_tiles, _SUBLANE, _LANE), jnp.float32),
        grid_spec=pltpu.PrefetchScalarGridSpec(
            num_scalar_prefetch=0,
            grid=(N, num_tiles),
            in_specs=[
                pl.BlockSpec((1, C, tile_chunks, _LANE), lambda n, t: (n, 0, t, 0)),
                pl.BlockSpec((1, tile_chunks, _LANE), lambda n, t: (n, t, 0)),
            ],
            out_specs=pl.BlockSpec((1, 1, _SUBLANE, _LANE), lambda n, t: (n, t, 0, 0)),
        ),
        compiler_params=pltpu.CompilerParams(
            dimension_semantics=("parallel", "parallel"),
            vmem_limit_bytes=32 * 1024 * 1024),
        cost_estimate=cost,
    )(logits, tgt)

    # Final reduction of the tiny partial-sum slab + mean, in plain JAX.
    return jnp.sum(partials) / jnp.float32(N * HW)


def _reference(output: jax.Array, target: jax.Array) -> jax.Array:
    """Pure-JAX reference mirroring torch.nn.CrossEntropyLoss (mean reduction)."""
    N, C, H, W = output.shape
    logits = jnp.transpose(output, (0, 2, 3, 1)).reshape(-1, C).astype(jnp.float32)
    tgt = target.reshape(-1).astype(jnp.int32)
    logp = jax.nn.log_softmax(logits, axis=-1)
    nll = -jnp.take_along_axis(logp, tgt[:, None], axis=-1)[:, 0]
    return jnp.mean(nll)


if __name__ == "__main__":
    key = jax.random.PRNGKey(0)
    k1, k2 = jax.random.split(key)

    N, C, H, W = 2, 4, 16, 16
    output = jax.random.normal(k1, (N, C, H, W), dtype=jnp.float32)
    target = jax.random.randint(k2, (N, H, W), 0, C, dtype=jnp.int32)

    loss = keypoint_cross_entropy_loss(output, target)
    jax.block_until_ready(loss)

    ref = _reference(output, target)
    assert jnp.allclose(loss, ref, rtol=1e-5, atol=1e-5), (loss, ref)

    print("KERNEL_OK")
</pallas_src>

<mosaic_0001>
module attributes {stable_mosaic.version = 11 : i64} {
  func.func @_ce_partial_kernel(%arg0: i32, %arg1: i32, %arg2: memref<1x4x2x128xf32, #tpu.memory_space<vmem>>, %arg3: memref<1x2x128xi32, #tpu.memory_space<vmem>>, %arg4: memref<1x1x8x128xf32, #tpu.memory_space<vmem>>) attributes {dimension_semantics = [#tpu.dimension_semantics<parallel>, #tpu.dimension_semantics<parallel>], iteration_bounds = array<i64: 2, 1>, scalar_prefetch = 0 : i64, scratch_operands = 0 : i64, tpu.core_type = #tpu.core_type<tc>, window_params = [{transform_indices = @transform_0, window_bounds = array<i64: 1, 4, 2, 128>}, {transform_indices = @transform_1, window_bounds = array<i64: 1, 2, 128>}, {transform_indices = @transform_2, window_bounds = array<i64: 1, 1, 8, 128>}]} {
    %c0 = arith.constant 0 : index
    %c0_0 = arith.constant 0 : index
    %c0_1 = arith.constant 0 : index
    %0 = vector.load %arg3[%c0, %c0_0, %c0_1] : memref<1x2x128xi32, #tpu.memory_space<vmem>>, vector<1x2x128xi32>
    %1 = vector.shape_cast %0 : vector<1x2x128xi32> to vector<2x128xi32>
    %c0_2 = arith.constant 0 : index
    %c0_3 = arith.constant 0 : index
    %c0_4 = arith.constant 0 : index
    %c0_5 = arith.constant 0 : index
    %2 = vector.load %arg2[%c0_2, %c0_3, %c0_4, %c0_5] : memref<1x4x2x128xf32, #tpu.memory_space<vmem>>, vector<1x1x2x128xf32>
    %3 = vector.shape_cast %2 : vector<1x1x2x128xf32> to vector<2x128xf32>
    %c0_6 = arith.constant 0 : index
    %c1 = arith.constant 1 : index
    %c0_7 = arith.constant 0 : index
    %c0_8 = arith.constant 0 : index
    %4 = vector.load %arg2[%c0_6, %c1, %c0_7, %c0_8] : memref<1x4x2x128xf32, #tpu.memory_space<vmem>>, vector<1x1x2x128xf32>
    %5 = vector.shape_cast %4 : vector<1x1x2x128xf32> to vector<2x128xf32>
    %6 = arith.maximumf %3, %5 : vector<2x128xf32>
    %c0_9 = arith.constant 0 : index
    %c2 = arith.constant 2 : index
    %c0_10 = arith.constant 0 : index
    %c0_11 = arith.constant 0 : index
    %7 = vector.load %arg2[%c0_9, %c2, %c0_10, %c0_11] : memref<1x4x2x128xf32, #tpu.memory_space<vmem>>, vector<1x1x2x128xf32>
    %8 = vector.shape_cast %7 : vector<1x1x2x128xf32> to vector<2x128xf32>
    %9 = arith.maximumf %6, %8 : vector<2x128xf32>
    %c0_12 = arith.constant 0 : index
    %c3 = arith.constant 3 : index
    %c0_13 = arith.constant 0 : index
    %c0_14 = arith.constant 0 : index
    %10 = vector.load %arg2[%c0_12, %c3, %c0_13, %c0_14] : memref<1x4x2x128xf32, #tpu.memory_space<vmem>>, vector<1x1x2x128xf32>
    %11 = vector.shape_cast %10 : vector<1x1x2x128xf32> to vector<2x128xf32>
    %12 = arith.maximumf %9, %11 : vector<2x128xf32>
    %cst = arith.constant 0.000000e+00 : f32
    %13 = vector.broadcast %cst : f32 to vector<2x128xf32>
    %cst_15 = arith.constant 0.000000e+00 : f32
    %14 = vector.broadcast %cst_15 : f32 to vector<2x128xf32>
    %c0_16 = arith.constant 0 : index
    %c0_17 = arith.constant 0 : index
    %c0_18 = arith.constant 0 : index
    %c0_19 = arith.constant 0 : index
    %15 = vector.load %arg2[%c0_16, %c0_17, %c0_18, %c0_19] : memref<1x4x2x128xf32, #tpu.memory_space<vmem>>, vector<1x1x2x128xf32>
    %16 = vector.shape_cast %15 : vector<1x1x2x128xf32> to vector<2x128xf32>
    %17 = arith.subf %16, %12 : vector<2x128xf32>
    %18 = math.exp %17 : vector<2x128xf32>
    %19 = arith.addf %13, %18 : vector<2x128xf32>
    %c0_i32 = arith.constant 0 : i32
    %20 = vector.broadcast %c0_i32 : i32 to vector<2x128xi32>
    %21 = arith.cmpi eq, %1, %20 : vector<2x128xi32>
    %cst_20 = arith.constant 0.000000e+00 : f32
    %22 = vector.broadcast %cst_20 : f32 to vector<2x128xf32>
    %23 = arith.select %21, %16, %22 : vector<2x128xi1>, vector<2x128xf32>
    %24 = arith.addf %14, %23 : vector<2x128xf32>
    %c0_21 = arith.constant 0 : index
    %c1_22 = arith.constant 1 : index
    %c0_23 = arith.constant 0 : index
    %c0_24 = arith.constant 0 : index
    %25 = vector.load %arg2[%c0_21, %c1_22, %c0_23, %c0_24] : memref<1x4x2x128xf32, #tpu.memory_space<vmem>>, vector<1x1x2x128xf32>
    %26 = vector.shape_cast %25 : vector<1x1x2x128xf32> to vector<2x128xf32>
    %27 = arith.subf %26, %12 : vector<2x128xf32>
    %28 = math.exp %27 : vector<2x128xf32>
    %29 = arith.addf %19, %28 : vector<2x128xf32>
    %c1_i32 = arith.constant 1 : i32
    %30 = vector.broadcast %c1_i32 : i32 to vector<2x128xi32>
    %31 = arith.cmpi eq, %1, %30 : vector<2x128xi32>
    %cst_25 = arith.constant 0.000000e+00 : f32
    %32 = vector.broadcast %cst_25 : f32 to vector<2x128xf32>
    %33 = arith.select %31, %26, %32 : vector<2x128xi1>, vector<2x128xf32>
    %34 = arith.addf %24, %33 : vector<2x128xf32>
    %c0_26 = arith.constant 0 : index
    %c2_27 = arith.constant 2 : index
    %c0_28 = arith.constant 0 : index
    %c0_29 = arith.constant 0 : index
    %35 = vector.load %arg2[%c0_26, %c2_27, %c0_28, %c0_29] : memref<1x4x2x128xf32, #tpu.memory_space<vmem>>, vector<1x1x2x128xf32>
    %36 = vector.shape_cast %35 : vector<1x1x2x128xf32> to vector<2x128xf32>
    %37 = arith.subf %36, %12 : vector<2x128xf32>
    %38 = math.exp %37 : vector<2x128xf32>
    %39 = arith.addf %29, %38 : vector<2x128xf32>
    %c2_i32 = arith.constant 2 : i32
    %40 = vector.broadcast %c2_i32 : i32 to vector<2x128xi32>
    %41 = arith.cmpi eq, %1, %40 : vector<2x128xi32>
    %cst_30 = arith.constant 0.000000e+00 : f32
    %42 = vector.broadcast %cst_30 : f32 to vector<2x128xf32>
    %43 = arith.select %41, %36, %42 : vector<2x128xi1>, vector<2x128xf32>
    %44 = arith.addf %34, %43 : vector<2x128xf32>
    %c0_31 = arith.constant 0 : index
    %c3_32 = arith.constant 3 : index
    %c0_33 = arith.constant 0 : index
    %c0_34 = arith.constant 0 : index
    %45 = vector.load %arg2[%c0_31, %c3_32, %c0_33, %c0_34] : memref<1x4x2x128xf32, #tpu.memory_space<vmem>>, vector<1x1x2x128xf32>
    %46 = vector.shape_cast %45 : vector<1x1x2x128xf32> to vector<2x128xf32>
    %47 = arith.subf %46, %12 : vector<2x128xf32>
    %48 = math.exp %47 : vector<2x128xf32>
    %49 = arith.addf %39, %48 : vector<2x128xf32>
    %c3_i32 = arith.constant 3 : i32
    %50 = vector.broadcast %c3_i32 : i32 to vector<2x128xi32>
    %51 = arith.cmpi eq, %1, %50 : vector<2x128xi32>
    %cst_35 = arith.constant 0.000000e+00 : f32
    %52 = vector.broadcast %cst_35 : f32 to vector<2x128xf32>
    %53 = arith.select %51, %46, %52 : vector<2x128xi1>, vector<2x128xf32>
    %54 = arith.addf %44, %53 : vector<2x128xf32>
    %55 = math.log %49 : vector<2x128xf32>
    %56 = arith.addf %12, %55 : vector<2x128xf32>
    %57 = arith.subf %56, %54 : vector<2x128xf32>
    %cst_36 = arith.constant dense<0.000000e+00> : vector<128xf32>
    %58 = vector.multi_reduction <add>, %57, %cst_36 [0] : vector<2x128xf32> to vector<128xf32>
    %59 = vector.shape_cast %58 : vector<128xf32> to vector<1x128xf32>
    %60 = tpu.iota {dimensions = array<i32: 0>} : vector<8x128xi32>
    %c0_i32_37 = arith.constant 0 : i32
    %61 = vector.broadcast %c0_i32_37 : i32 to vector<8x128xi32>
    %62 = arith.cmpi eq, %60, %61 : vector<8x128xi32>
    %63 = vector.shape_cast %59 : vector<1x128xf32> to vector<1x128xf32>
    %64 = vector.broadcast %63 : vector<1x128xf32> to vector<8x128xf32>
    %cst_38 = arith.constant 0.000000e+00 : f32
    %65 = vector.broadcast %cst_38 : f32 to vector<8x128xf32>
    %66 = arith.select %62, %64, %65 : vector<8x128xi1>, vector<8x128xf32>
    %67 = vector.shape_cast %66 : vector<8x128xf32> to vector<1x1x8x128xf32>
    %c0_39 = arith.constant 0 : index
    %c0_40 = arith.constant 0 : index
    %c0_41 = arith.constant 0 : index
    %c0_42 = arith.constant 0 : index
    %68 = vector.load %arg4[%c0_39, %c0_40, %c0_41, %c0_42] : memref<1x1x8x128xf32, #tpu.memory_space<vmem>>, vector<1x1x8x128xf32>
    tpu.vector_store %arg4[%c0_39, %c0_40, %c0_41, %c0_42], %67 {strides = array<i32>} : memref<1x1x8x128xf32, #tpu.memory_space<vmem>>, vector<1x1x8x128xf32>,
    return
  }
  func.func @transform_0(%arg0: i32, %arg1: i32) -> (i32, i32, i32, i32) {
    %c0_i32 = arith.constant 0 : i32
    %c0_i32_0 = arith.constant 0 : i32
    %c0_i32_1 = arith.constant 0 : i32
    return %arg0, %c0_i32, %arg1, %c0_i32_0 : i32, i32, i32, i32
  }
  func.func @transform_1(%arg0: i32, %arg1: i32) -> (i32, i32, i32) {
    %c0_i32 = arith.constant 0 : i32
    %c0_i32_0 = arith.constant 0 : i32
    return %arg0, %arg1, %c0_i32 : i32, i32, i32
  }
  func.func @transform_2(%arg0: i32, %arg1: i32) -> (i32, i32, i32, i32) {
    %c0_i32 = arith.constant 0 : i32
    %c0_i32_0 = arith.constant 0 : i32
    %c0_i32_1 = arith.constant 0 : i32
    return %arg0, %arg1, %c0_i32, %c0_i32_0 : i32, i32, i32, i32
  }
}

</mosaic_0001>

<llo_original>
// kernel: keypoint_cross_entropy_loss.1
$region0: #{keypoint_cross_entropy_loss.1}
  #allocation0 [shape = 'u32[]', space=smem, size = 0x4, offset = 0x4, fixed_abs, tag = 'smem constant byte address 0x4 - core index']
  #allocation1 [shape = 'u32[144,128]{1,0:T(1,128)}', space=vmem, size = 0x12000, scoped, tag = 'internal scratch']
  %s0 = inlined_call_operand.vmem [shape: f32[2,4,2,128], index: 0, kind: input, shape index: {}]
  %s1 = inlined_call_operand.vmem [shape: s32[2,2,128], index: 1, kind: input, shape index: {}]
  %s2 = inlined_call_operand.vmem [shape: f32[2,1,8,128], index: 2, kind: output, shape index: {}]
  %s3 = sld [smem:[#allocation0]]
  $region41: #{keypoint_cross_entropy_loss.1} parent=0
    _
  %s5 = ssub.s32 1, %s3
  %s6 = scalar_select 0, %s5, %s3
  loop: start=0, step=1, limit=4
  $region2: #{keypoint_cross_entropy_loss.1} parent=0 // loop_pre_header
    _
  $region3: #{keypoint_cross_entropy_loss.1} parent=0 // loop_header
    %s8 = sphi 0, %s12
    %p9 = scmp.ge.s32.totalorder %s8, 4
    %s15 = sphi 0, %s27
    %s16 = sphi 0, %s23
    %s17 = sphi 0, %s15
    %s18 = sphi 0, %s16
    %s19 = sphi 0, %s17
    %s20 = sphi 0, %s18
    %s32 = sphi 0, %s34
    %s35 = sphi 0, %s32
    %s36 = sphi 0, %s35
    %s52 = sphi 0, %s36
    %s60 = sphi 0, %s62
    %s63 = sphi 0, %s60
    %s64 = sphi 0, %s63
    %s80 = sphi 0, %s64
    %s88 = sphi 0, %s90
    %s91 = sphi 0, %s88
    %s92 = sphi 0, %s91
    %s108 = sphi 0, %s92
  $region4: #{keypoint_cross_entropy_loss.1} parent=0 // loop_header_branch
    %11 = sbr.rel (%p9) target = $region8
  $region5: #{keypoint_cross_entropy_loss.1} parent=0 // loop_body
    %s13 = ssub.s32 %s8, 1
    %s14 = ssub.s32 %s8, 2
    %s21 = sadd.s32 1, %s16
    %p22 = scmp.ge.s32.totalorder %s21, 1
    %s23 = scalar_select %p22, 0, %s21
    %s24 = sadd.s32 1, %s15
    %s25 = scalar_select %p22, %s24, %s15
    %p26 = scmp.ge.s32.totalorder %s25, 2
    %s27 = scalar_select %p26, 0, %s25
    %s28 = ssub.s32 %s15, %s27
    %s29 = ssub.s32 %s16, %s23
    %s30 = sor.u32 %s28, %s29
    %p31 = scmp.eq.s32.totalorder %s30, 0
    %s33 = sadd.s32 %s32, 1
    %s34 = scalar_select %p31, %s32, %s33
    %p37 = pneg %p31
    %p38 = scmp.eq.s32.totalorder %s8, 1
    %p39 = por %p37, %p38
    %p40 = scmp.ne.s32.totalorder %s32, %s35
    %p41 = scmp.eq.s32.totalorder %s8, 0
    %p42 = por %p40, %p41
    %p43 = scmp.ne.s32.totalorder %s32, %s35
    %p44 = scmp.eq.s32.totalorder %s13, 1
    %p45 = por %p43, %p44
    %p46 = scmp.ne.s32.totalorder %s35, %s36
    %p47 = scmp.eq.s32.totalorder %s13, 0
    %p48 = por %p46, %p47
    %p49 = scmp.ne.s32.totalorder %s35, %s36
    %p50 = scmp.eq.s32.totalorder %s14, 1
    %p51 = por %p49, %p50
    %p53 = scmp.ne.s32.totalorder %s36, %s52
    %p54 = scmp.eq.s32.totalorder %s14, 0
    %p55 = por %p53, %p54
    %s56 = ssub.s32 %s15, %s27
    %s57 = ssub.s32 %s16, %s23
    %s58 = sor.u32 %s56, %s57
    %p59 = scmp.eq.s32.totalorder %s58, 0
    %s61 = sadd.s32 %s60, 1
    %s62 = scalar_select %p59, %s60, %s61
    %p65 = pneg %p59
    %p66 = scmp.eq.s32.totalorder %s8, 1
    %p67 = por %p65, %p66
    %p68 = scmp.ne.s32.totalorder %s60, %s63
    %p69 = scmp.eq.s32.totalorder %s8, 0
    %p70 = por %p68, %p69
    %p71 = scmp.ne.s32.totalorder %s60, %s63
    %p72 = scmp.eq.s32.totalorder %s13, 1
    %p73 = por %p71, %p72
    %p74 = scmp.ne.s32.totalorder %s63, %s64
    %p75 = scmp.eq.s32.totalorder %s13, 0
    %p76 = por %p74, %p75
    %p77 = scmp.ne.s32.totalorder %s63, %s64
    %p78 = scmp.eq.s32.totalorder %s14, 1
    %p79 = por %p77, %p78
    %p81 = scmp.ne.s32.totalorder %s64, %s80
    %p82 = scmp.eq.s32.totalorder %s14, 0
    %p83 = por %p81, %p82
    %s84 = ssub.s32 %s15, %s27
    %s85 = ssub.s32 %s16, %s23
    %s86 = sor.u32 %s84, %s85
    %p87 = scmp.eq.s32.totalorder %s86, 0
    %s89 = sadd.s32 %s88, 1
    %s90 = scalar_select %p87, %s88, %s89
    %p93 = pneg %p87
    %p94 = scmp.eq.s32.totalorder %s8, 1
    %p95 = por %p93, %p94
    %p96 = scmp.ne.s32.totalorder %s88, %s91
    %p97 = scmp.eq.s32.totalorder %s8, 0
    %p98 = por %p96, %p97
    %p99 = scmp.ne.s32.totalorder %s88, %s91
    %p100 = scmp.eq.s32.totalorder %s13, 1
    %p101 = por %p99, %p100
    %p102 = scmp.ne.s32.totalorder %s91, %s92
    %p103 = scmp.eq.s32.totalorder %s13, 0
    %p104 = por %p102, %p103
    %p105 = scmp.ne.s32.totalorder %s91, %s92
    %p106 = scmp.eq.s32.totalorder %s14, 1
    %p107 = por %p105, %p106
    %p109 = scmp.ne.s32.totalorder %s92, %s108
    %p110 = scmp.eq.s32.totalorder %s14, 0
    %p111 = por %p109, %p110
    %p112 = scmp.le.s32.totalorder 1, %s8
    %p113 = scmp.lt.s32.totalorder %s8, 3
    %p114 = pnand %p112, %p113
    %p115 = pneg %p114
    // Predicated region
    $region9: #{keypoint_cross_entropy_loss.1} parent=5 // pred_check
      _
    $region10: #{keypoint_cross_entropy_loss.1} parent=5 // pred_check_branch
      %117 = sbr.rel (%p114) target = $region12
    $region11: #{keypoint_cross_entropy_loss.1} parent=5 // pred_region
      %s118 = ssub.s32 %s8, 1
    $region12: #{keypoint_cross_entropy_loss.1} parent=5 // pred_fallthru
      _
    %p119 = scmp.lt.s32.totalorder %s8, 2
    // Predicated region
    $region13: #{keypoint_cross_entropy_loss.1} parent=5 // pred_check
      %p120 = pneg %p119
    $region14: #{keypoint_cross_entropy_loss.1} parent=5 // pred_check_branch
      %122 = sbr.rel (%p120) target = $region16
    $region15: #{keypoint_cross_entropy_loss.1} parent=5 // pred_region
      // Predicated region
      $region17: #{keypoint_cross_entropy_loss.1} parent=15 // pred_check
        %p123 = pneg %p42
      $region18: #{keypoint_cross_entropy_loss.1} parent=15 // pred_check_branch
        %125 = sbr.rel (%p123) target = $region20
      $region19: #{keypoint_cross_entropy_loss.1} parent=15 // pred_region
        %p126 = scmp.lt.s32.totalorder %s15, 1
        %s127 = scalar_select %p126, %s15, 1
        %p128 = scmp.lt.s32.totalorder %s16, 0
        %s129 = scalar_select %p128, %s16, 0
        %s130 = smul.addr %s127, 4
        %s131 = sadd.s32 %s129, %s130
        %s132 = smul.addr %s131, 2
        %s133 = scalar_lea.vmem %s0, %s132
      $region20: #{keypoint_cross_entropy_loss.1} parent=15 // pred_fallthru
        _
      // Predicated region
      $region21: #{keypoint_cross_entropy_loss.1} parent=15 // pred_check
        %p134 = pneg %p70
      $region22: #{keypoint_cross_entropy_loss.1} parent=15 // pred_check_branch
        %136 = sbr.rel (%p134) target = $region24
      $region23: #{keypoint_cross_entropy_loss.1} parent=15 // pred_region
        %p137 = scmp.lt.s32.totalorder %s15, 1
        %s138 = scalar_select %p137, %s15, 1
        %p139 = scmp.lt.s32.totalorder %s16, 0
        %s140 = scalar_select %p139, %s16, 0
        %s141 = sadd.s32 %s140, %s138
        %s142 = smul.addr %s141, 2
        %s143 = scalar_lea.vmem %s1, %s142
      $region24: #{keypoint_cross_entropy_loss.1} parent=15 // pred_fallthru
        _
    $region16: #{keypoint_cross_entropy_loss.1} parent=5 // pred_fallthru
      _
    %p144 = scmp.le.s32.totalorder 1, %s8
    %p145 = scmp.lt.s32.totalorder %s8, 3
    %p146 = pnand %p144, %p145
    %p147 = pneg %p146
    // Predicated region
    $region25: #{keypoint_cross_entropy_loss.1} parent=5 // pred_check
      _
    $region26: #{keypoint_cross_entropy_loss.1} parent=5 // pred_check_branch
      %149 = sbr.rel (%p146) target = $region28
    $region27: #{keypoint_cross_entropy_loss.1} parent=5 // pred_region
      %s150 = ssub.s32 %s8, 1
      %p151 = scmp.lt.s32.totalorder %s17, 1
      %s152 = scalar_select %p151, %s17, 1
      %p153 = scmp.lt.s32.totalorder %s18, 0
      %s154 = scalar_select %p153, %s18, 0
      %s155 = smul.addr %s152, 4
      %s156 = sadd.s32 %s154, %s155
      %s157 = smul.addr %s156, 2
      %s158 = scalar_lea.vmem %s0, %s157
      %p159 = pneg %p48
      %p160 = pneg %p45
      %p161 = scmp.lt.s32.totalorder %s17, 1
      %s162 = scalar_select %p161, %s17, 1
      %p163 = scmp.lt.s32.totalorder %s18, 0
      %s164 = scalar_select %p163, %s18, 0
      %s165 = sadd.s32 %s164, %s162
      %s166 = smul.addr %s165, 2
      %s167 = scalar_lea.vmem %s1, %s166
      %p168 = pneg %p76
      %p169 = pneg %p73
      %p170 = pneg %p104
      %p171 = pneg %p101
      %p172 = scmp.lt.s32.totalorder %s17, 1
      %s173 = scalar_select %p172, %s17, 1
      %p174 = scmp.lt.s32.totalorder %s18, 0
      %s175 = scalar_select %p174, %s18, 0
      %s176 = sadd.s32 %s175, %s173
      %s177 = smul.addr %s176, 8
      %s178 = scalar_lea.vmem %s2, %s177
      %p179 = scmp.lt.s32.totalorder %s17, 1
      %s180 = scalar_select %p179, %s17, 1
      %p181 = scmp.lt.s32.totalorder %s18, 0
      %s182 = scalar_select %p181, %s18, 0
      %s183 = smul.addr %s180, 4
      %s184 = sadd.s32 %s182, %s183
      %s185 = smul.addr %s184, 2
      %s186 = scalar_lea.vmem %s0, %s185
      %p187 = scmp.lt.s32.totalorder %s17, 1
      %s188 = scalar_select %p187, %s17, 1
      %p189 = scmp.lt.s32.totalorder %s18, 0
      %s190 = scalar_select %p189, %s18, 0
      %s191 = sadd.s32 %s190, %s188
      %s192 = smul.addr %s191, 2
      %s193 = scalar_lea.vmem %s1, %s192
      %p194 = scmp.lt.s32.totalorder %s17, 1
      %s195 = scalar_select %p194, %s17, 1
      %p196 = scmp.lt.s32.totalorder %s18, 0
      %s197 = scalar_select %p196, %s18, 0
      %s198 = sadd.s32 %s197, %s195
      %s199 = smul.addr %s198, 8
      %s200 = scalar_lea.vmem %s2, %s199
      %v201 = vld [vmem:[%s193] sm:$0x3]
      %v202 = vld [vmem:[%s186] sm:$0x3]
      %s203 = scalar_lea.vmem %s186, 2
      %v204 = vld [vmem:[%s203] sm:$0x3]
      %v205 = vmax.f32 %v202, %v204
      %s206 = scalar_lea.vmem %s186, 4
      %v207 = vld [vmem:[%s206] sm:$0x3]
      %v208 = vmax.f32 %v205, %v207
      %s209 = scalar_lea.vmem %s186, 6
      %v210 = vld [vmem:[%s209] sm:$0x3]
      %v211 = vmax.f32 %v208, %v210
      %v212 = vsub.f32 %v202, %v211
      %v213 = vmul.f32 %v212, 1.442695
      %v214 = vpow.pop %v213
      %v215 = vadd.f32 %v214, 0.0
      %vm216 = vcmp.eq.s32.totalorder %v201, 0
      %v217 = vsel %vm216, %v202, 0.0
      %v218 = vadd.f32 %v217, 0.0
      %v219 = vsub.f32 %v204, %v211
      %v220 = vmul.f32 %v219, 1.442695
      %v221 = vpow.pop %v220
      %v222 = vadd.f32 %v215, %v221
      %vm223 = vcmp.eq.s32.totalorder %v201, 1
      %v224 = vsel %vm223, %v204, 0.0
      %v225 = vadd.f32 %v218, %v224
      %v226 = vsub.f32 %v207, %v211
      %v227 = vmul.f32 %v226, 1.442695
      %v228 = vpow.pop %v227
      %v229 = vadd.f32 %v222, %v228
      %vm230 = vcmp.eq.s32.totalorder %v201, 2
      %v231 = vsel %vm230, %v207, 0.0
      %v232 = vadd.f32 %v225, %v231
      %v233 = vsub.f32 %v210, %v211
      %v234 = vmul.f32 %v233, 1.442695
      %v235 = vpow.pop %v234
      %v236 = vadd.f32 %v229, %v235
      %vm237 = vcmp.eq.s32.totalorder %v201, 3
      %v238 = vsel %vm237, %v210, 0.0
      %v239 = vadd.f32 %v232, %v238
      %v240 = vlog2.pop %v236
      %v241 = vmul.f32 %v240, 0.6931472
      %v242 = vadd.f32 %v211, %v241
      %v243 = vsub.f32 %v242, %v239
      %vm244 = vcmask 1041408
      %v245 = vsel %vm244, %v243, 0.0
      %v246 = vrot.slane %v245, 4
      %v247 = vadd.f32 %v245, %v246
      %v248 = vrot.slane %v247, 2
      %v249 = vadd.f32 %v247, %v248
      %v250 = vrot.slane %v249, 1
      %v251 = vadd.f32 %v249, %v250
      %v252 = vlaneseq
      %v253 = vshrl.u32 %v252, 7
      %vm254 = vcmp.eq.s32.totalorder %v253, 0
      %v255 = vsel %vm254, %v251, 0.0
      %256 = vst [vmem:[%s200] sm:$0xff] %v255
      %p257 = scmp.lt.s32.totalorder %s17, 1
      %s258 = scalar_select %p257, %s17, 1
      %p259 = scmp.lt.s32.totalorder %s18, 0
      %s260 = scalar_select %p259, %s18, 0
      %s261 = sadd.s32 %s260, %s258
      %s262 = smul.addr %s261, 8
      %s263 = scalar_lea.vmem %s2, %s262
      // Predicated region
      $region29: #{keypoint_cross_entropy_loss.1} parent=27 // pred_check
        %p264 = pneg %p101
      $region30: #{keypoint_cross_entropy_loss.1} parent=27 // pred_check_branch
        %266 = sbr.rel (%p264) target = $region32
      $region31: #{keypoint_cross_entropy_loss.1} parent=27 // pred_region
        _
      $region32: #{keypoint_cross_entropy_loss.1} parent=27 // pred_fallthru
        _
    $region28: #{keypoint_cross_entropy_loss.1} parent=5 // pred_fallthru
      _
    %p267 = scmp.le.s32.totalorder 2, %s8
    // Predicated region
    $region33: #{keypoint_cross_entropy_loss.1} parent=5 // pred_check
      %p268 = pneg %p267
    $region34: #{keypoint_cross_entropy_loss.1} parent=5 // pred_check_branch
      %270 = sbr.rel (%p268) target = $region36
    $region35: #{keypoint_cross_entropy_loss.1} parent=5 // pred_region
      %s271 = ssub.s32 %s8, 2
      // Predicated region
      $region37: #{keypoint_cross_entropy_loss.1} parent=35 // pred_check
        %p272 = pneg %p107
      $region38: #{keypoint_cross_entropy_loss.1} parent=35 // pred_check_branch
        %274 = sbr.rel (%p272) target = $region40
      $region39: #{keypoint_cross_entropy_loss.1} parent=35 // pred_region
        %p275 = scmp.lt.s32.totalorder %s19, 1
        %s276 = scalar_select %p275, %s19, 1
        %p277 = scmp.lt.s32.totalorder %s20, 0
        %s278 = scalar_select %p277, %s20, 0
        %s279 = sadd.s32 %s278, %s276
        %s280 = smul.addr %s279, 8
        %s281 = scalar_lea.vmem %s2, %s280
      $region40: #{keypoint_cross_entropy_loss.1} parent=35 // pred_fallthru
        _
    $region36: #{keypoint_cross_entropy_loss.1} parent=5 // pred_fallthru
      _
  $region6: #{keypoint_cross_entropy_loss.1} parent=0 // loop_footer
    %s12 = sadd.s32 1, %s8
  $region7: #{keypoint_cross_entropy_loss.1} parent=0 // loop_footer_branch
    %7 = sbr.rel target = $region3
  $region8: #{keypoint_cross_entropy_loss.1} parent=0 // loop_exit
    _

</llo_original>
